<compile_context>
chip_gen: v7x
topology: tpu7x:2x2x1
jax: 0.10.0
libtpu: 0.0.40
codegen_flags: <defaults>
</compile_context>

<pallas_src>
import jax
import jax.numpy as jnp
import numpy as np
from jax.experimental import pallas as pl
from jax.experimental.pallas import tpu as pltpu


def _round_up(a, b):
    return ((a + b - 1) // b) * b


def _nonlinear_sage_kernel(p_ref, d_ref, o_ref):
    # p_ref (SMEM, (7,)): [w1_0, w1_1, b1_0, b1_1, w2_0, w2_1, b2]
    # d_ref (48, TC): rows 0:24  = A  (SAGE weights folded into edge counts),
    #                 rows 24:48 = x; row index = feature_j * 8 + group_r.
    # o_ref (8, TC):  o[r, c] = output of graph g = r*C + c.
    a = d_ref[0:24, :]                                   # (24, TC)
    x = d_ref[24:48, :]                                  # (24, TC)
    prod = a * x                                         # dense VPU mul
    # per-graph aggregate at node 0: h0[r,c] = sum_j A[j,g] * x[3g+j]
    h0 = prod[0:8, :] + prod[8:16, :] + prod[16:24, :]   # (8, TC)
    # activation MLP: Linear(1,2) -> ReLU -> Linear(2,1), unrolled elementwise
    hid0 = jnp.maximum(h0 * p_ref[0] + p_ref[2], 0.0)
    hid1 = jnp.maximum(h0 * p_ref[1] + p_ref[3], 0.0)
    o_ref[...] = hid0 * p_ref[4] + hid1 * p_ref[5] + p_ref[6]


def build_edge_table(edge_index, num_graphs):
    """W[j, g] = #edges (3g + j) -> (3g).  Cache this for a static graph."""
    src = jnp.asarray(edge_index[0], jnp.int32)
    dst = jnp.asarray(edge_index[1], jnp.int32)
    contrib = ((dst % 3 == 0) & ((src // 3) == (dst // 3))).astype(jnp.float32)
    return jnp.zeros((3, num_graphs), jnp.float32).at[src % 3, dst // 3].add(contrib)


def nonlinear_sage_forward(x, edge_index, params, *, tile_c=32768):
    x = jnp.asarray(x, jnp.float32).reshape(-1)
    N = x.shape[0]
    assert N % 3 == 0, "three-nodes-per-graph dataset"
    G = N // 3

    # Host-side structural guard (skipped if inputs are traced): the (3, G)
    # block-diagonal edge table cannot represent edges into a graph's node 0
    # that come from a different graph.
    try:
        src_np = np.asarray(edge_index[0])
        dst_np = np.asarray(edge_index[1])
    except Exception:  # traced edge_index: skip the check
        src_np = None
    if src_np is not None:
        bad = (dst_np % 3 == 0) & ((src_np // 3) != (dst_np // 3))
        if bad.any():
            raise ValueError(
                "nonlinear_sage_forward: edge into a graph's node 0 from a "
                "different 3-node graph is not supported by this kernel")

    wl, wr, w1, b1, w2, b2 = params
    # Fold the SAGE weights into the edge table on the host:
    #   h0[g] = sum_j A[j, g] * x[3g + j],  A = wl*W with wr added on row 0.
    W = build_edge_table(edge_index, G)     # NOTE: precompute/cache for static graphs
    A = (wl[0] * W).at[0, :].add(wr[0])

    # 7 MLP scalars packed into a single SMEM array.
    p = jnp.concatenate([w1, b1, w2, b2]).astype(jnp.float32)   # (7,)

    # Sublane-dense layout: graph g -> (r, c) with g = r*C + c; 8 graphs share
    # a lane column.  Lane tile tc is large, but sized for >= 2 grid steps
    # whenever possible so both v7x TensorCores get work.
    C = max(_round_up(pl.cdiv(G, 8), 128), 128)
    tc = min(tile_c, max(128, _round_up(pl.cdiv(C, 2), 128)))
    C = _round_up(C, tc)
    Gp = 8 * C
    pad = Gp - G

    x3 = jnp.pad(x.reshape(G, 3).T, ((0, 0), (0, pad)))         # (3, Gp)
    A3 = jnp.pad(A, ((0, 0), (0, pad)))                         # (3, Gp)
    a24 = A3.reshape(3, 8, C).reshape(24, C)                    # row = j*8 + r
    x24 = x3.reshape(3, 8, C).reshape(24, C)
    d = jnp.concatenate([a24, x24], axis=0)                     # (48, C), one DMA stream

    # Double-buffered (48, tc) input + (8, tc) output blocks.
    vmem_bytes = 2 * (48 + 8) * tc * 4
    out2d = pl.pallas_call(
        _nonlinear_sage_kernel,
        out_shape=jax.ShapeDtypeStruct((8, C), jnp.float32),
        grid=(C // tc,),
        in_specs=[
            pl.BlockSpec(memory_space=pltpu.MemorySpace.SMEM),   # packed scalars
            pl.BlockSpec((48, tc), lambda i: (0, i)),            # combined A | x
        ],
        out_specs=pl.BlockSpec((8, tc), lambda i: (0, i)),
        compiler_params=pltpu.CompilerParams(
            dimension_semantics=("parallel",),
            vmem_limit_bytes=min(max(vmem_bytes + (4 << 20), 16 << 20), 48 << 20)),
    )(p, d)

    # Padded graphs (g >= G) hold ReLU(b1)@w2 + b2 garbage; trimmed here.
    return out2d.reshape(-1)[:G]


def reference_forward(x, edge_index, params):
    # pure-JAX reference (mirrors PyG SAGEConv(sum, no bias) + MLP activation)
    wl, wr, w1, b1, w2, b2 = params
    x = jnp.asarray(x, jnp.float32).reshape(-1, 1)
    N = x.shape[0]
    src, dst = edge_index[0], edge_index[1]
    agg = jnp.zeros((N, 1), jnp.float32).at[dst].add(x[src])
    h = wl[0] * agg + wr[0] * x
    h0 = h.reshape(-1, 3)[:, 0:1]
    hid = jnp.maximum(h0 * w1[None, :] + b1[None, :], 0.0)
    out = hid @ w2[:, None] + b2[0]
    return out.reshape(-1)


def make_edges(num_graphs):
    # per-graph path 0-1-2 (both directions) plus an extra 2->0 edge on
    # even-numbered graphs so edge counts differ per graph.
    base = np.arange(num_graphs, dtype=np.int64) * 3
    src = [base, base + 1, base + 1, base + 2]
    dst = [base + 1, base, base + 2, base + 1]
    even = base[::2]
    src.append(even + 2)
    dst.append(even)
    return jnp.array(np.stack([np.concatenate(src), np.concatenate(dst)]),
                     dtype=jnp.int32)


if __name__ == "__main__":
    key = jax.random.PRNGKey(0)
    k_x1, k_x2, k_wl, k_wr, k_w1, k_b1, k_w2, k_b2 = jax.random.split(key, 8)

    # deterministic parameters (shapes from the module's __init__):
    #   SAGEConv lin_l weight (1,1) -> wl, lin_r weight (1,1) -> wr (bias=False)
    #   MLP: Linear(1,2) weight -> w1 (2,), bias -> b1 (2,)
    #        Linear(2,1) weight -> w2 (2,), bias -> b2 (1,)
    params = (
        jax.random.uniform(k_wl, (1,), jnp.float32, -1.0, 1.0),
        jax.random.uniform(k_wr, (1,), jnp.float32, -1.0, 1.0),
        jax.random.uniform(k_w1, (2,), jnp.float32, -1.0, 1.0),
        jax.random.uniform(k_b1, (2,), jnp.float32, -1.0, 1.0),
        jax.random.uniform(k_w2, (2,), jnp.float32, -0.7, 0.7),
        jax.random.uniform(k_b2, (1,), jnp.float32, -0.7, 0.7),
    )

    # small primary test (G=8 graphs, 24 nodes) + a slightly larger one that
    # exercises padding and a 2-step grid.
    for G, kx in ((8, k_x1), (1200, k_x2)):
        N = 3 * G
        x = jax.random.normal(kx, (N, 1), jnp.float32)
        edge_index = make_edges(G)

        out = jax.block_until_ready(nonlinear_sage_forward(x, edge_index, params))
        ref = reference_forward(x, edge_index, params)

        assert out.shape == (G,)
        assert np.allclose(np.asarray(out), np.asarray(ref), atol=1e-5, rtol=1e-5)

    print("KERNEL_OK")
</pallas_src>

<mosaic_0001>
module attributes {stable_mosaic.version = 11 : i64} {
  func.func @_nonlinear_sage_kernel(%arg0: i32, %arg1: memref<7xf32, #tpu.memory_space<smem>>, %arg2: memref<48x128xf32, #tpu.memory_space<vmem>>, %arg3: memref<8x128xf32, #tpu.memory_space<vmem>>) attributes {dimension_semantics = [#tpu.dimension_semantics<parallel>], iteration_bounds = array<i64: 1>, scalar_prefetch = 0 : i64, scratch_operands = 0 : i64, tpu.core_type = #tpu.core_type<tc>, window_params = [{transform_indices = @transform_0, window_bounds = array<i64: 7>}, {transform_indices = @transform_1, window_bounds = array<i64: 48, 128>}, {transform_indices = @transform_2, window_bounds = array<i64: 8, 128>}]} {
    %c0 = arith.constant 0 : index
    %c0_0 = arith.constant 0 : index
    %0 = vector.load %arg2[%c0, %c0_0] : memref<48x128xf32, #tpu.memory_space<vmem>>, vector<24x128xf32>
    %c24 = arith.constant 24 : index
    %c0_1 = arith.constant 0 : index
    %1 = vector.load %arg2[%c24, %c0_1] : memref<48x128xf32, #tpu.memory_space<vmem>>, vector<24x128xf32>
    %2 = arith.mulf %0, %1 : vector<24x128xf32>
    %3 = vector.extract_strided_slice %2 {offsets = [0, 0], sizes = [8, 128], strides = [1, 1]} : vector<24x128xf32> to vector<8x128xf32>
    %4 = vector.extract_strided_slice %2 {offsets = [8, 0], sizes = [8, 128], strides = [1, 1]} : vector<24x128xf32> to vector<8x128xf32>
    %5 = arith.addf %3, %4 : vector<8x128xf32>
    %6 = vector.extract_strided_slice %2 {offsets = [16, 0], sizes = [8, 128], strides = [1, 1]} : vector<24x128xf32> to vector<8x128xf32>
    %7 = arith.addf %5, %6 : vector<8x128xf32>
    %c0_2 = arith.constant 0 : index
    %8 = memref.load %arg1[%c0_2] : memref<7xf32, #tpu.memory_space<smem>>
    %9 = vector.broadcast %8 : f32 to vector<8x128xf32>
    %10 = arith.mulf %7, %9 : vector<8x128xf32>
    %c2 = arith.constant 2 : index
    %11 = memref.load %arg1[%c2] : memref<7xf32, #tpu.memory_space<smem>>
    %12 = vector.broadcast %11 : f32 to vector<8x128xf32>
    %13 = arith.addf %10, %12 : vector<8x128xf32>
    %cst = arith.constant 0.000000e+00 : f32
    %14 = vector.broadcast %cst : f32 to vector<8x128xf32>
    %15 = arith.maximumf %13, %14 : vector<8x128xf32>
    %c1 = arith.constant 1 : index
    %16 = memref.load %arg1[%c1] : memref<7xf32, #tpu.memory_space<smem>>
    %17 = vector.broadcast %16 : f32 to vector<8x128xf32>
    %18 = arith.mulf %7, %17 : vector<8x128xf32>
    %c3 = arith.constant 3 : index
    %19 = memref.load %arg1[%c3] : memref<7xf32, #tpu.memory_space<smem>>
    %20 = vector.broadcast %19 : f32 to vector<8x128xf32>
    %21 = arith.addf %18, %20 : vector<8x128xf32>
    %cst_3 = arith.constant 0.000000e+00 : f32
    %22 = vector.broadcast %cst_3 : f32 to vector<8x128xf32>
    %23 = arith.maximumf %21, %22 : vector<8x128xf32>
    %c4 = arith.constant 4 : index
    %24 = memref.load %arg1[%c4] : memref<7xf32, #tpu.memory_space<smem>>
    %25 = vector.broadcast %24 : f32 to vector<8x128xf32>
    %26 = arith.mulf %15, %25 : vector<8x128xf32>
    %c5 = arith.constant 5 : index
    %27 = memref.load %arg1[%c5] : memref<7xf32, #tpu.memory_space<smem>>
    %28 = vector.broadcast %27 : f32 to vector<8x128xf32>
    %29 = arith.mulf %23, %28 : vector<8x128xf32>
    %30 = arith.addf %26, %29 : vector<8x128xf32>
    %c6 = arith.constant 6 : index
    %31 = memref.load %arg1[%c6] : memref<7xf32, #tpu.memory_space<smem>>
    %32 = vector.broadcast %31 : f32 to vector<8x128xf32>
    %33 = arith.addf %30, %32 : vector<8x128xf32>
    %c0_4 = arith.constant 0 : index
    %c0_5 = arith.constant 0 : index
    %34 = vector.load %arg3[%c0_4, %c0_5] : memref<8x128xf32, #tpu.memory_space<vmem>>, vector<8x128xf32>
    tpu.vector_store %arg3[%c0_4, %c0_5], %33 {strides = array<i32>} : memref<8x128xf32, #tpu.memory_space<vmem>>, vector<8x128xf32>,
    return
  }
  func.func @transform_0(%arg0: i32) -> i32 {
    %c0_i32 = arith.constant 0 : i32
    %c0_i32_0 = arith.constant 0 : i32
    return %c0_i32 : i32
  }
  func.func @transform_1(%arg0: i32) -> (i32, i32) {
    %c0_i32 = arith.constant 0 : i32
    %c0_i32_0 = arith.constant 0 : i32
    return %c0_i32, %arg0 : i32, i32
  }
  func.func @transform_2(%arg0: i32) -> (i32, i32) {
    %c0_i32 = arith.constant 0 : i32
    %c0_i32_0 = arith.constant 0 : i32
    return %c0_i32, %arg0 : i32, i32
  }
}

</mosaic_0001>

<llo_original>
// kernel: tpu_custom_call.1
$region0: #{tpu_custom_call.1}
  #allocation0 [shape = 'u32[]', space=smem, size = 0x4, offset = 0x4, fixed_abs, tag = 'smem constant byte address 0x4 - core index']
  #allocation1 [shape = 'u32[144,128]{1,0:T(1,128)}', space=vmem, size = 0x12000, scoped, tag = 'internal scratch']
  %s0 = inlined_call_operand.hbm [shape: f32[7], index: 0, kind: input, shape index: {}]
  %s1 = inlined_call_operand.hbm [shape: f32[48,128], index: 1, kind: input, shape index: {}]
  %s2 = inlined_call_operand.hbm [shape: f32[8,128], index: 2, kind: output, shape index: {}]
  %s3 = sld [smem:[#allocation0]]
  $region26: #{tpu_custom_call.1} parent=0
    _
  %s5 = ssub.s32 1, %s3
  %s6 = scalar_select 0, %s5, %s3
  $region1: #{tpu_custom_call.1} parent=0
    #allocation2 [shape = 'u8[512]{0}', space=smem, size = 0x200, scoped, tag = 'input window, operand 0, single buffered']
    #allocation3 [shape = 's32[1]{0}', space=sflag, size = 0x4, scoped, tag = 'scoped memory for tpu_custom_call.1']
    #allocation4 [shape = 's32[1]{0}', space=sflag, size = 0x4, scoped, tag = 'scoped memory for tpu_custom_call.1']
    #allocation5 [shape = 's32[1]{0}', space=sflag, size = 0x4, scoped, tag = 'scoped memory for tpu_custom_call.1']
    #allocation6 [shape = 'u8[24576]{0}', space=vmem, size = 0x6000, scoped, tag = 'input window, operand 1, single buffered']
    #allocation7 [shape = 'u8[4096]{0}', space=vmem, size = 0x1000, scoped, tag = 'output window, operand 0, single buffered']
    %7 = vsyncpa [#allocation5], 0
    %8 = vsyncpa [#allocation3], 0
    %9 = vsyncpa [#allocation4], 0
    // Predicated region
    $region2: #{tpu_custom_call.1} parent=1 // pred_check
      _
    $region3: #{tpu_custom_call.1} parent=1 // pred_check_branch
      %11 = sbr.rel (0) target = $region5
    $region4: #{tpu_custom_call.1} parent=1 // pred_region
      %s13 = ssub.s32 16, 16
      %14 = vsyncadd [#allocation5], %s13
      %17 = dma.hbm_to_smem %s0, 16, [#allocation2], [#allocation5]
    $region5: #{tpu_custom_call.1} parent=1 // pred_fallthru
      _
    // Predicated region
    $region6: #{tpu_custom_call.1} parent=1 // pred_check
      _
    $region7: #{tpu_custom_call.1} parent=1 // pred_check_branch
      %19 = sbr.rel (0) target = $region9
    $region8: #{tpu_custom_call.1} parent=1 // pred_region
      %s21 = ssub.s32 768, 768
      %22 = vsyncadd [#allocation3], %s21
      %s23 = sshll.u32 [#allocation6], 4
      %s24 = int_to_ptr.vmem [resolvable:$true] %s23
      %29 = dma.hbm_to_vmem [thread:$0]  %s1, 768, %s24, [#allocation3], 128, 128, 8
    $region9: #{tpu_custom_call.1} parent=1 // pred_fallthru
      _
    // Predicated region
    $region10: #{tpu_custom_call.1} parent=1 // pred_check
      _
    $region11: #{tpu_custom_call.1} parent=1 // pred_check_branch
      %31 = sbr.rel (0) target = $region13
    $region12: #{tpu_custom_call.1} parent=1 // pred_region
      %32 = dma.done [#allocation5], 16
    $region13: #{tpu_custom_call.1} parent=1 // pred_fallthru
      _
    // Predicated region
    $region14: #{tpu_custom_call.1} parent=1 // pred_check
      _
    $region15: #{tpu_custom_call.1} parent=1 // pred_check_branch
      %34 = sbr.rel (0) target = $region17
    $region16: #{tpu_custom_call.1} parent=1 // pred_region
      %35 = dma.done [#allocation3], 768
    $region17: #{tpu_custom_call.1} parent=1 // pred_fallthru
      _
    %36 = sfence
    %v37 = vld [vmem:[#allocation6] sm:$0xff]
    %v38 = vld [vmem:[#allocation6 + $0x8] sm:$0xff]
    %v39 = vld [vmem:[#allocation6 + $0x10] sm:$0xff]
    %v40 = vld [vmem:[#allocation6 + $0x18] sm:$0xff]
    %v41 = vld [vmem:[#allocation6 + $0x20] sm:$0xff]
    %v42 = vld [vmem:[#allocation6 + $0x28] sm:$0xff]
    %v43 = vmul.f32 %v37, %v40
    %v44 = vmul.f32 %v38, %v41
    %v45 = vmul.f32 %v39, %v42
    %v46 = vadd.f32 %v43, %v44
    %v47 = vadd.f32 %v46, %v45
    %s48 = sld [smem:[#allocation2]]
    %v49 = vstv %s48
    %v50 = vmul.f32 %v47, %v49
    %s51 = sld [smem:[#allocation2 + $0x2]]
    %v52 = vstv %s51
    %v53 = vadd.f32 %v50, %v52
    %v54 = vmax.f32 %v53, 0.0
    %s55 = sld [smem:[#allocation2 + $0x1]]
    %v56 = vstv %s55
    %v57 = vmul.f32 %v47, %v56
    %s58 = sld [smem:[#allocation2 + $0x3]]
    %v59 = vstv %s58
    %v60 = vadd.f32 %v57, %v59
    %v61 = vmax.f32 %v60, 0.0
    %s62 = sld [smem:[#allocation2 + $0x4]]
    %v63 = vstv %s62
    %v64 = vmul.f32 %v54, %v63
    %s65 = sld [smem:[#allocation2 + $0x5]]
    %v66 = vstv %s65
    %v67 = vmul.f32 %v61, %v66
    %v68 = vadd.f32 %v64, %v67
    %s69 = sld [smem:[#allocation2 + $0x6]]
    %v70 = vstv %s69
    %v71 = vadd.f32 %v68, %v70
    %72 = vst [vmem:[#allocation7] sm:$0xff] %v71
    // Predicated region
    $region18: #{tpu_custom_call.1} parent=1 // pred_check
      _
    $region19: #{tpu_custom_call.1} parent=1 // pred_check_branch
      %74 = sbr.rel (0) target = $region21
    $region20: #{tpu_custom_call.1} parent=1 // pred_region
      %s76 = ssub.s32 128, 128
      %77 = vsyncadd [#allocation4], %s76
      %s79 = sshll.u32 [#allocation7], 4
      %s80 = int_to_ptr.vmem [resolvable:$true] %s79
      %82 = dma.vmem_to_hbm [thread:$0]  %s80, 128, %s2, [#allocation4]
    $region21: #{tpu_custom_call.1} parent=1 // pred_fallthru
      _
    // Predicated region
    $region22: #{tpu_custom_call.1} parent=1 // pred_check
      _
    $region23: #{tpu_custom_call.1} parent=1 // pred_check_branch
      %84 = sbr.rel (0) target = $region25
    $region24: #{tpu_custom_call.1} parent=1 // pred_region
      %85 = dma.done [#allocation4], 128
    $region25: #{tpu_custom_call.1} parent=1 // pred_fallthru
      _
    %86 = vsyncpa [#allocation3], 1
    %87 = vsyncpa [#allocation4], 1
    %88 = vsyncpa [#allocation5], 1

</llo_original>
